<compile_context>
chip_gen: v7x
topology: tpu7x:2x2x1
jax: 0.10.0
libtpu: 0.0.40
codegen_flags: <defaults>
</compile_context>

<pallas_src>
import jax
import jax.numpy as jnp
from jax.experimental import pallas as pl
from jax.experimental.pallas import tpu as pltpu

LANES = 128
MAX_TILE_ROWS = 2048  # (2048,128) f32 tile = 1 MiB; 3 inputs x 2 buffers = 6 MiB VMEM


def _round_up(x, m):
    return ((x + m - 1) // m) * m


def _num_tensorcores():
    # Only v7x has 2 TensorCores per chip that a "parallel" leading grid axis can
    # shard across; on 1-TC chips a size-2 leading axis is a pure serial loop.
    try:
        kind = jax.devices()[0].device_kind.lower()
    except Exception:
        return 1
    return 2 if "v7" in kind else 1


def _make_kernel(tile_rows, tiles_per_core, need_mask):
    tile_elems = tile_rows * LANES

    def kernel(n_ref, pred_ref, targ_ref, prob_ref, out_ref, acc_ref):
        i = pl.program_id(1)

        @pl.when(i == 0)
        def _():
            acc_ref[...] = jnp.zeros_like(acc_ref)

        x = pred_ref[...]
        y = targ_ref[...]
        p = prob_ref[...]

        # bce(x, y) = softplus(x) - x*y ; softplus(x) = max(x,0) + log1p(exp(-|x|))
        # loss      = (1-p)*bce(x,y) - p*bce(x,1-y) = softplus(x)*(1-2p) + x*(p-y)
        # unbiased  = loss / (1-2p)                = softplus(x) + x*(p-y)/(1-2p)
        sp = jnp.maximum(x, 0.0) + jnp.log1p(jnp.exp(-jnp.abs(x)))
        den = 1.0 - 2.0 * p
        r = pl.reciprocal(den, approx=True)     # single EUP push
        r = r * (2.0 - den * r)                 # one Newton step -> ~f32-exact, cheaper than exact divide
        unbiased = sp + x * (p - y) * r

        if need_mask:
            # Select (not mask*value) so garbage in partial/duplicated boundary
            # blocks can never poison the sum.
            # TODO(synk): int32 index math overflows for inputs with >= 2^31 elements.
            c = pl.program_id(0)
            blk = c * tiles_per_core + i
            remaining = n_ref[0] - blk * tile_elems
            row_idx = jax.lax.broadcasted_iota(jnp.int32, (tile_rows, LANES), 0)
            lane_idx = jax.lax.broadcasted_iota(jnp.int32, (tile_rows, LANES), 1)
            local = row_idx * LANES + lane_idx
            unbiased = jnp.where(local < remaining, unbiased, 0.0)

        # (8,128) accumulator: per-step work is pure vreg-wise VALU adds, tiny
        # acc load/store; the only cross-lane reduce is in the final pl.when.
        acc_ref[...] += jnp.sum(unbiased.reshape(tile_rows // 8, 8, LANES), axis=0)

        @pl.when(i == tiles_per_core - 1)
        def _():
            out_ref[...] = jnp.sum(acc_ref[...]).reshape(1, 1, 1)

    return kernel


def backward_method_time(predictions, target, probabilities):
    """JAX/Pallas equivalent of the PyTorch module's forward pass. Returns a scalar."""
    pred = jnp.ravel(predictions).astype(jnp.float32)
    targ = jnp.ravel(target).astype(jnp.float32)
    prob = jnp.ravel(probabilities).astype(jnp.float32)

    n = pred.shape[0]
    if n == 0:
        return jnp.float32(0.0)

    # Pad only when the element count is not lane-aligned (a copy is unavoidable
    # there to obtain a 2-D (rows,128) view); the aligned case is a free reshape.
    rem = n % LANES
    if rem:
        pad = LANES - rem
        pred = jnp.pad(pred, (0, pad))
        targ = jnp.pad(targ, (0, pad))
        prob = jnp.pad(prob, (0, pad))
    rows = pred.shape[0] // LANES

    tile_rows = min(MAX_TILE_ROWS, _round_up(rows, 8))
    num_tiles = -(-rows // tile_rows)

    num_cores = _num_tensorcores()
    if num_tiles < num_cores:
        num_cores = 1
    tiles_per_core = -(-num_tiles // num_cores)

    covered = num_cores * tiles_per_core * tile_rows * LANES
    need_mask = covered != n          # dropped at trace time for exact coverage
    last_block = num_tiles - 1

    pred2 = pred.reshape(rows, LANES)
    targ2 = targ.reshape(rows, LANES)
    prob2 = prob.reshape(rows, LANES)
    n_arr = jnp.array([n], dtype=jnp.int32)

    def in_map(c, i, n_ref):
        # Clamp: with a 2-core split and an odd tile count, core 1's last logical
        # block may lie entirely past the array; reuse the last real block (its
        # contribution is zeroed by the in-kernel select).
        return (jnp.minimum(c * tiles_per_core + i, last_block), 0)

    kernel = _make_kernel(tile_rows, tiles_per_core, need_mask)

    partials = pl.pallas_call(
        kernel,
        out_shape=jax.ShapeDtypeStruct((num_cores, 1, 1), jnp.float32),
        grid_spec=pltpu.PrefetchScalarGridSpec(
            num_scalar_prefetch=1,
            grid=(num_cores, tiles_per_core),
            in_specs=[
                pl.BlockSpec((tile_rows, LANES), in_map),
                pl.BlockSpec((tile_rows, LANES), in_map),
                pl.BlockSpec((tile_rows, LANES), in_map),
            ],
            out_specs=pl.BlockSpec((1, 1, 1), lambda c, i, n_ref: (c, 0, 0)),
            scratch_shapes=[pltpu.VMEM((8, LANES), jnp.float32)],
        ),
        compiler_params=pltpu.CompilerParams(
            # "parallel" shards the leading axis across TCs where the HW allows it.
            # TODO(synk): switch that axis to pltpu.CORE_PARALLEL on v7x if profiling
            # shows it lowering to a serial loop.
            dimension_semantics=("parallel", "arbitrary"),
        ),
        cost_estimate=pl.CostEstimate(
            flops=12 * n, transcendentals=3 * n, bytes_accessed=12 * n
        ),
    )(n_arr, pred2, targ2, prob2)

    return jnp.sum(partials) / jnp.float32(n)


def _reference(predictions, target, probabilities):
    """Pure-JAX reference of the PyTorch forward (unfolded form), for sanity checking."""
    x = jnp.ravel(predictions).astype(jnp.float32)
    y = jnp.ravel(target).astype(jnp.float32)
    p = jnp.ravel(probabilities).astype(jnp.float32)
    sp = jnp.maximum(x, 0.0) + jnp.log1p(jnp.exp(-jnp.abs(x)))
    lf = sp - x * y
    ls = sp - x * (1.0 - y)
    loss = (1.0 - p) * lf - p * ls
    return jnp.mean(loss / (1.0 - 2.0 * p))


if __name__ == "__main__":
    key = jax.random.PRNGKey(0)
    k1, k2, k3 = jax.random.split(key, 3)

    # Small synthetic shapes: per-pixel binary predictions (B, C, H, W).
    shape = (2, 4, 16, 16)
    predictions = jax.random.normal(k1, shape, dtype=jnp.float32)
    target = jax.random.bernoulli(k2, p=0.5, shape=shape).astype(jnp.float32)
    # label-noise probabilities, kept away from 0.5 (as the formula requires)
    probabilities = jax.random.uniform(k3, shape, dtype=jnp.float32, minval=0.05, maxval=0.3)

    out = backward_method_time(predictions, target, probabilities)
    out = jax.block_until_ready(out)

    ref = jax.block_until_ready(_reference(predictions, target, probabilities))
    assert jnp.allclose(out, ref, rtol=1e-4, atol=1e-5), (out, ref)

    print("KERNEL_OK")
</pallas_src>

<mosaic_0001>
module attributes {stable_mosaic.version = 11 : i64} {
  func.func @kernel(%arg0: i32, %arg1: i32, %arg2: memref<1xi32, #tpu.memory_space<smem>>, %arg3: memref<16x128xf32, #tpu.memory_space<vmem>>, %arg4: memref<16x128xf32, #tpu.memory_space<vmem>>, %arg5: memref<16x128xf32, #tpu.memory_space<vmem>>, %arg6: memref<1x1x1xf32, #tpu.memory_space<vmem>>, %arg7: memref<8x128xf32, #tpu.memory_space<vmem>>) attributes {dimension_semantics = [#tpu.dimension_semantics<parallel>, #tpu.dimension_semantics<arbitrary>], iteration_bounds = array<i64: 1, 1>, scalar_prefetch = 1 : i64, scratch_operands = 1 : i64, tpu.core_type = #tpu.core_type<tc>, window_params = [{transform_indices = @transform_0, window_bounds = array<i64: 16, 128>}, {transform_indices = @transform_1, window_bounds = array<i64: 16, 128>}, {transform_indices = @transform_2, window_bounds = array<i64: 16, 128>}, {transform_indices = @transform_3, window_bounds = array<i64: 1, 1, 1>}]} {
    %c0_i32 = arith.constant 0 : i32
    %0 = arith.cmpi eq, %arg1, %c0_i32 : i32
    %1 = arith.extui %0 : i1 to i32
    %c0_i32_0 = arith.constant 0 : i32
    %2 = arith.cmpi ne, %1, %c0_i32_0 : i32
    scf.if %2 {
      %cst_17 = arith.constant 0.000000e+00 : f32
      %35 = vector.broadcast %cst_17 : f32 to vector<8x128xf32>
      %c0_18 = arith.constant 0 : index
      %c0_19 = arith.constant 0 : index
      %36 = vector.load %arg7[%c0_18, %c0_19] : memref<8x128xf32, #tpu.memory_space<vmem>>, vector<8x128xf32>
      tpu.vector_store %arg7[%c0_18, %c0_19], %35 {strides = array<i32>} : memref<8x128xf32, #tpu.memory_space<vmem>>, vector<8x128xf32>,
    } else {
    }
    %c0 = arith.constant 0 : index
    %c0_1 = arith.constant 0 : index
    %3 = vector.load %arg3[%c0, %c0_1] : memref<16x128xf32, #tpu.memory_space<vmem>>, vector<16x128xf32>
    %c0_2 = arith.constant 0 : index
    %c0_3 = arith.constant 0 : index
    %4 = vector.load %arg4[%c0_2, %c0_3] : memref<16x128xf32, #tpu.memory_space<vmem>>, vector<16x128xf32>
    %c0_4 = arith.constant 0 : index
    %c0_5 = arith.constant 0 : index
    %5 = vector.load %arg5[%c0_4, %c0_5] : memref<16x128xf32, #tpu.memory_space<vmem>>, vector<16x128xf32>
    %cst = arith.constant 0.000000e+00 : f32
    %6 = vector.broadcast %cst : f32 to vector<16x128xf32>
    %7 = arith.maximumf %3, %6 : vector<16x128xf32>
    %8 = math.absf %3 : vector<16x128xf32>
    %cst_6 = arith.constant 0.000000e+00 : f32
    %9 = vector.broadcast %cst_6 : f32 to vector<16x128xf32>
    %10 = arith.subf %9, %8 : vector<16x128xf32>
    %11 = math.exp %10 : vector<16x128xf32>
    %12 = math.log1p %11 : vector<16x128xf32>
    %13 = arith.addf %7, %12 : vector<16x128xf32>
    %cst_7 = arith.constant 2.000000e+00 : f32
    %14 = vector.broadcast %cst_7 : f32 to vector<16x128xf32>
    %15 = arith.mulf %14, %5 : vector<16x128xf32>
    %cst_8 = arith.constant 1.000000e+00 : f32
    %16 = vector.broadcast %cst_8 : f32 to vector<16x128xf32>
    %17 = arith.subf %16, %15 : vector<16x128xf32>
    %18 = tpu.reciprocal %17 {approx = true} : vector<16x128xf32> -> vector<16x128xf32>
    %19 = arith.mulf %17, %18 : vector<16x128xf32>
    %cst_9 = arith.constant 2.000000e+00 : f32
    %20 = vector.broadcast %cst_9 : f32 to vector<16x128xf32>
    %21 = arith.subf %20, %19 : vector<16x128xf32>
    %22 = arith.mulf %18, %21 : vector<16x128xf32>
    %23 = arith.subf %5, %4 : vector<16x128xf32>
    %24 = arith.mulf %3, %23 : vector<16x128xf32>
    %25 = arith.mulf %24, %22 : vector<16x128xf32>
    %26 = arith.addf %13, %25 : vector<16x128xf32>
    %c0_10 = arith.constant 0 : index
    %c0_11 = arith.constant 0 : index
    %27 = vector.load %arg7[%c0_10, %c0_11] : memref<8x128xf32, #tpu.memory_space<vmem>>, vector<8x128xf32>
    %28 = vector.shape_cast %26 : vector<16x128xf32> to vector<2x8x128xf32>
    %cst_12 = arith.constant dense<0.000000e+00> : vector<8x128xf32>
    %29 = vector.multi_reduction <add>, %28, %cst_12 [0] : vector<2x8x128xf32> to vector<8x128xf32>
    %30 = arith.addf %27, %29 : vector<8x128xf32>
    %c0_13 = arith.constant 0 : index
    %c0_14 = arith.constant 0 : index
    %31 = vector.load %arg7[%c0_13, %c0_14] : memref<8x128xf32, #tpu.memory_space<vmem>>, vector<8x128xf32>
    tpu.vector_store %arg7[%c0_13, %c0_14], %30 {strides = array<i32>} : memref<8x128xf32, #tpu.memory_space<vmem>>, vector<8x128xf32>,
    %c0_i32_15 = arith.constant 0 : i32
    %32 = arith.cmpi eq, %arg1, %c0_i32_15 : i32
    %33 = arith.extui %32 : i1 to i32
    %c0_i32_16 = arith.constant 0 : i32
    %34 = arith.cmpi ne, %33, %c0_i32_16 : i32
    scf.if %34 {
      %c0_17 = arith.constant 0 : index
      %c0_18 = arith.constant 0 : index
      %35 = vector.load %arg7[%c0_17, %c0_18] : memref<8x128xf32, #tpu.memory_space<vmem>>, vector<8x128xf32>
      %36 = vector.shape_cast %35 : vector<8x128xf32> to vector<1x8x128xf32>
      %cst_19 = arith.constant dense<0.000000e+00> : vector<1xf32>
      %37 = vector.multi_reduction <add>, %36, %cst_19 [1, 2] : vector<1x8x128xf32> to vector<1xf32>
      %38 = vector.shape_cast %37 : vector<1xf32> to vector<1x1x1xf32>
      %39 = vector.extract %38[0, 0, 0] : f32 from vector<1x1x1xf32>
      %40 = vector.broadcast %39 : f32 to vector<1x1x1xf32>
      %c0_20 = arith.constant 0 : index
      %c0_21 = arith.constant 0 : index
      %c0_22 = arith.constant 0 : index
      %41 = vector.load %arg6[%c0_20, %c0_21, %c0_22] : memref<1x1x1xf32, #tpu.memory_space<vmem>>, vector<1x1x1xf32>
      tpu.vector_store %arg6[%c0_20, %c0_21, %c0_22], %40 {strides = array<i32>} : memref<1x1x1xf32, #tpu.memory_space<vmem>>, vector<1x1x1xf32>,
    } else {
    }
    return
  }
  func.func @transform_0(%arg0: i32, %arg1: i32, %arg2: memref<1xi32, #tpu.memory_space<smem>>) -> (i32, i32) {
    %c1_i32 = arith.constant 1 : i32
    %0 = arith.muli %arg0, %c1_i32 : i32
    %1 = arith.addi %0, %arg1 : i32
    %c0_i32 = arith.constant 0 : i32
    %2 = arith.minsi %1, %c0_i32 : i32
    %c0_i32_0 = arith.constant 0 : i32
    %c0_i32_1 = arith.constant 0 : i32
    return %2, %c0_i32_0 : i32, i32
  }
  func.func @transform_1(%arg0: i32, %arg1: i32, %arg2: memref<1xi32, #tpu.memory_space<smem>>) -> (i32, i32) {
    %c1_i32 = arith.constant 1 : i32
    %0 = arith.muli %arg0, %c1_i32 : i32
    %1 = arith.addi %0, %arg1 : i32
    %c0_i32 = arith.constant 0 : i32
    %2 = arith.minsi %1, %c0_i32 : i32
    %c0_i32_0 = arith.constant 0 : i32
    %c0_i32_1 = arith.constant 0 : i32
    return %2, %c0_i32_0 : i32, i32
  }
  func.func @transform_2(%arg0: i32, %arg1: i32, %arg2: memref<1xi32, #tpu.memory_space<smem>>) -> (i32, i32) {
    %c1_i32 = arith.constant 1 : i32
    %0 = arith.muli %arg0, %c1_i32 : i32
    %1 = arith.addi %0, %arg1 : i32
    %c0_i32 = arith.constant 0 : i32
    %2 = arith.minsi %1, %c0_i32 : i32
    %c0_i32_0 = arith.constant 0 : i32
    %c0_i32_1 = arith.constant 0 : i32
    return %2, %c0_i32_0 : i32, i32
  }
  func.func @transform_3(%arg0: i32, %arg1: i32, %arg2: memref<1xi32, #tpu.memory_space<smem>>) -> (i32, i32, i32) {
    %c0_i32 = arith.constant 0 : i32
    %c0_i32_0 = arith.constant 0 : i32
    %c0_i32_1 = arith.constant 0 : i32
    return %arg0, %c0_i32, %c0_i32_0 : i32, i32, i32
  }
}

</mosaic_0001>

<llo_original>
// kernel: tpu_custom_call.1
$region0: #{tpu_custom_call.1}
  #allocation0 [shape = 'u32[]', space=smem, size = 0x4, offset = 0x4, fixed_abs, tag = 'smem constant byte address 0x4 - core index']
  #allocation1 [shape = 'u32[144,128]{1,0:T(1,128)}', space=vmem, size = 0x12000, scoped, tag = 'internal scratch']
  #allocation2 [shape = 'f32[8,128]{1,0:T(8,128)}', space=vmem, size = 0x1000, scoped, tag = 'scratch operand']
  #allocation3 [shape = 's32[1]{0}', space=sflag, size = 0x4, scoped, tag = 'scoped memory for tpu_custom_call.1']
  #allocation4 [shape = 's32[1]{0:T(128)S(6)}', space=smem, size = 0x200, scoped, tag = 'prefetched SMEM operand 0']
  %s0 = inlined_call_operand.<no memory space> [shape: s32[1], index: 0, kind: input, shape index: {}]
  %s1 = inlined_call_operand.hbm [shape: f32[16,128], index: 1, kind: input, shape index: {}]
  %s2 = inlined_call_operand.hbm [shape: f32[16,128], index: 2, kind: input, shape index: {}]
  %s3 = inlined_call_operand.hbm [shape: f32[16,128], index: 3, kind: input, shape index: {}]
  %s4 = inlined_call_operand.hbm [shape: f32[1,1,1], index: 4, kind: output, shape index: {}]
  %s5 = sld [smem:[#allocation0]]
  $region42: #{tpu_custom_call.1} parent=0
    _
  %s7 = ssub.s32 1, %s5
  %s8 = scalar_select 0, %s7, %s5
  %9 = sst [smem:[#allocation4]] %s0
  $region1: #{tpu_custom_call.1} parent=0
    #allocation5 [shape = 'u8[8192]{0}', space=vmem, size = 0x2000, scoped, tag = 'input window, operand 1, single buffered']
    #allocation6 [shape = 's32[1]{0}', space=sflag, size = 0x4, scoped, tag = 'scoped memory for tpu_custom_call.1']
    #allocation7 [shape = 's32[1]{0}', space=sflag, size = 0x4, scoped, tag = 'scoped memory for tpu_custom_call.1']
    #allocation8 [shape = 'u8[8192]{0}', space=vmem, size = 0x2000, scoped, tag = 'input window, operand 2, single buffered']
    #allocation9 [shape = 's32[1]{0}', space=sflag, size = 0x4, scoped, tag = 'scoped memory for tpu_custom_call.1']
    #allocation10 [shape = 'u8[8192]{0}', space=vmem, size = 0x2000, scoped, tag = 'input window, operand 3, single buffered']
    #allocation11 [shape = 'u8[512]{0}', space=vmem, size = 0x400, scoped, tag = 'output window, operand 0, single buffered']
    %10 = vsyncpa [#allocation6], 0
    %11 = vsyncpa [#allocation9], 0
    %12 = vsyncpa [#allocation7], 0
    // Predicated region
    $region2: #{tpu_custom_call.1} parent=1 // pred_check
      _
    $region3: #{tpu_custom_call.1} parent=1 // pred_check_branch
      %14 = sbr.rel (0) target = $region5
    $region4: #{tpu_custom_call.1} parent=1 // pred_region
      %s15 = sadd.s32 0, 0
      %p16 = scmp.lt.s32.totalorder %s15, 0
      %s17 = scalar_select %p16, %s15, 0
      %s18 = smul.u32 2, %s17
      %s20 = ssub.s32 256, 256
      %21 = vsyncadd [#allocation6], %s20
      %s22 = smul.addr %s18, 128
      %s23 = scalar_lea.hbm %s1, %s22
      %s24 = sshll.u32 [#allocation5], 4
      %s25 = int_to_ptr.vmem [resolvable:$true] %s24
      %30 = dma.hbm_to_vmem [thread:$0]  %s23, 256, %s25, [#allocation6], 128, 128, 8
    $region5: #{tpu_custom_call.1} parent=1 // pred_fallthru
      _
    // Predicated region
    $region6: #{tpu_custom_call.1} parent=1 // pred_check
      _
    $region7: #{tpu_custom_call.1} parent=1 // pred_check_branch
      %32 = sbr.rel (0) target = $region9
    $region8: #{tpu_custom_call.1} parent=1 // pred_region
      %s33 = sadd.s32 0, 0
      %p34 = scmp.lt.s32.totalorder %s33, 0
      %s35 = scalar_select %p34, %s33, 0
      %s36 = smul.u32 2, %s35
      %s38 = ssub.s32 256, 256
      %39 = vsyncadd [#allocation9], %s38
      %s40 = smul.addr %s36, 128
      %s41 = scalar_lea.hbm %s2, %s40
      %s42 = sshll.u32 [#allocation8], 4
      %s43 = int_to_ptr.vmem [resolvable:$true] %s42
      %48 = dma.hbm_to_vmem [thread:$0]  %s41, 256, %s43, [#allocation9], 128, 128, 8
    $region9: #{tpu_custom_call.1} parent=1 // pred_fallthru
      _
    // Predicated region
    $region10: #{tpu_custom_call.1} parent=1 // pred_check
      _
    $region11: #{tpu_custom_call.1} parent=1 // pred_check_branch
      %50 = sbr.rel (0) target = $region13
    $region12: #{tpu_custom_call.1} parent=1 // pred_region
      %s51 = sadd.s32 0, 0
      %p52 = scmp.lt.s32.totalorder %s51, 0
      %s53 = scalar_select %p52, %s51, 0
      %s54 = smul.u32 2, %s53
      %s56 = ssub.s32 256, 256
      %57 = vsyncadd [#allocation9], %s56
      %s58 = smul.addr %s54, 128
      %s59 = scalar_lea.hbm %s3, %s58
      %s60 = sshll.u32 [#allocation10], 4
      %s61 = int_to_ptr.vmem [resolvable:$true] %s60
      %66 = dma.hbm_to_vmem [thread:$0]  %s59, 256, %s61, [#allocation9], 128, 128, 8
    $region13: #{tpu_custom_call.1} parent=1 // pred_fallthru
      _
    // Predicated region
    $region14: #{tpu_custom_call.1} parent=1 // pred_check
      _
    $region15: #{tpu_custom_call.1} parent=1 // pred_check_branch
      %68 = sbr.rel (0) target = $region17
    $region16: #{tpu_custom_call.1} parent=1 // pred_region
      %69 = dma.done [#allocation6], 256
    $region17: #{tpu_custom_call.1} parent=1 // pred_fallthru
      _
    // Predicated region
    $region18: #{tpu_custom_call.1} parent=1 // pred_check
      _
    $region19: #{tpu_custom_call.1} parent=1 // pred_check_branch
      %71 = sbr.rel (0) target = $region21
    $region20: #{tpu_custom_call.1} parent=1 // pred_region
      %72 = dma.done [#allocation9], 256
    $region21: #{tpu_custom_call.1} parent=1 // pred_fallthru
      _
    // Predicated region
    $region22: #{tpu_custom_call.1} parent=1 // pred_check
      _
    $region23: #{tpu_custom_call.1} parent=1 // pred_check_branch
      %74 = sbr.rel (0) target = $region25
    $region24: #{tpu_custom_call.1} parent=1 // pred_region
      %75 = dma.done [#allocation9], 256
    $region25: #{tpu_custom_call.1} parent=1 // pred_fallthru
      _
    %s76 = sadd.s32 0, 0
    %p77 = scmp.lt.s32.totalorder %s76, 0
    %s78 = scalar_select %p77, %s76, 0
    %s79 = smul.u32 2, %s78
    %s80 = sadd.s32 0, 0
    %p81 = scmp.lt.s32.totalorder %s80, 0
    %s82 = scalar_select %p81, %s80, 0
    %s83 = smul.u32 2, %s82
    %s84 = sadd.s32 0, 0
    %p85 = scmp.lt.s32.totalorder %s84, 0
    %s86 = scalar_select %p85, %s84, 0
    %s87 = smul.u32 2, %s86
    %p88 = scmp.eq.s32.totalorder 0, 0
    // Predicated region
    $region26: #{tpu_custom_call.1} parent=1 // pred_check
      %p89 = pneg %p88
    $region27: #{tpu_custom_call.1} parent=1 // pred_check_branch
      %91 = sbr.rel (%p89) target = $region29
    $region28: #{tpu_custom_call.1} parent=1 // pred_region
      %92 = vst [vmem:[#allocation2] sm:$0xff] 0.0
    $region29: #{tpu_custom_call.1} parent=1 // pred_fallthru
      _
    %v93 = vld [vmem:[#allocation5] sm:$0xff]
    %v94 = vld [vmem:[#allocation5 + $0x8] sm:$0xff]
    %v95 = vld [vmem:[#allocation8] sm:$0xff]
    %v96 = vld [vmem:[#allocation8 + $0x8] sm:$0xff]
    %v97 = vld [vmem:[#allocation10] sm:$0xff]
    %v98 = vld [vmem:[#allocation10 + $0x8] sm:$0xff]
    %v99 = vmax.f32 %v93, 0.0
    %v100 = vmax.f32 %v94, 0.0
    %v101 = vand.u32 2147483647, %v93
    %v102 = vand.u32 2147483647, %v94
    %v103 = vsub.f32 0.0, %v101
    %v104 = vsub.f32 0.0, %v102
    %v105 = vmul.f32 %v103, 1.442695
    %v106 = vpow.pop %v105
    %v107 = vmul.f32 %v104, 1.442695
    %v108 = vpow.pop %v107
    %v109 = vadd.f32 %v106, 1.0
    %v110 = vlog2.pop %v109
    %v111 = vmul.f32 %v110, 0.6931472
    %v112 = vmul.f32 -0.5, %v106
    %v113 = vadd.f32 %v112, 1.0
    %v114 = vmul.f32 %v113, %v106
    %v115 = vand.u32 2147483647, %v106
    %vm116 = vcmp.lt.f32.partialorder %v115, 0.0004427343
    %v117 = vsel %vm116, %v114, %v111
    %v118 = vadd.f32 %v108, 1.0
    %v119 = vlog2.pop %v118
    %v120 = vmul.f32 %v119, 0.6931472
    %v121 = vmul.f32 -0.5, %v108
    %v122 = vadd.f32 %v121, 1.0
    %v123 = vmul.f32 %v122, %v108
    %v124 = vand.u32 2147483647, %v108
    %vm125 = vcmp.lt.f32.partialorder %v124, 0.0004427343
    %v126 = vsel %vm125, %v123, %v120
    %v127 = vadd.f32 %v99, %v117
    %v128 = vadd.f32 %v100, %v126
    %v129 = vmul.f32 %v97, 2.0
    %v130 = vmul.f32 %v98, 2.0
    %v131 = vsub.f32 1.0, %v129
    %v132 = vsub.f32 1.0, %v130
    %v133 = vrcp.pop %v131
    %v134 = vrcp.pop %v132
    %v135 = vmul.f32 %v131, %v133
    %v136 = vmul.f32 %v132, %v134
    %v137 = vsub.f32 2.0, %v135
    %v138 = vsub.f32 2.0, %v136
    %v139 = vmul.f32 %v133, %v137
    %v140 = vmul.f32 %v134, %v138
    %v141 = vsub.f32 %v97, %v95
    %v142 = vsub.f32 %v98, %v96
    %v143 = vmul.f32 %v93, %v141
    %v144 = vmul.f32 %v94, %v142
    %v145 = vmul.f32 %v143, %v139
    %v146 = vmul.f32 %v144, %v140
    %v147 = vadd.f32 %v127, %v145
    %v148 = vadd.f32 %v128, %v146
    %v149 = vld [vmem:[#allocation2] sm:$0xff]
    %v150 = vadd.f32 %v147, %v148
    %v151 = vadd.f32 %v149, %v150
    %152 = vst [vmem:[#allocation2] sm:$0xff] %v151
    // Predicated region
    $region30: #{tpu_custom_call.1} parent=1 // pred_check
      %p153 = pneg %p88
    $region31: #{tpu_custom_call.1} parent=1 // pred_check_branch
      %155 = sbr.rel (%p153) target = $region33
    $region32: #{tpu_custom_call.1} parent=1 // pred_region
      %v156 = vld [vmem:[#allocation2] sm:$0xff]
      %157 = vadd.xlane.f32.xlu0 %v156
      %v158 = vpop.xlane.xlu0 %157
      %v159 = vrot.slane %v158, 4
      %v160 = vadd.f32 %v158, %v159
      %v161 = vrot.slane %v160, 2
      %v162 = vadd.f32 %v160, %v161
      %v163 = vrot.slane %v162, 1
      %v164 = vadd.f32 %v162, %v163
      %s165 = vtos %v164
      %v166 = vstv %s165
      %vm167 = vcmask 0
      %168 = vst.msk [vmem:[#allocation11] sm:$0x1] %vm167, %v166
    $region33: #{tpu_custom_call.1} parent=1 // pred_fallthru
      _
    // Predicated region
    $region34: #{tpu_custom_call.1} parent=1 // pred_check
      _
    $region35: #{tpu_custom_call.1} parent=1 // pred_check_branch
      %170 = sbr.rel (0) target = $region37
    $region36: #{tpu_custom_call.1} parent=1 // pred_region
      %s172 = ssub.s32 16, 16
      %173 = vsyncadd [#allocation7], %s172
      %s175 = sshll.u32 [#allocation11], 4
      %s176 = int_to_ptr.vmem [resolvable:$true] %s175
      %178 = dma.vmem_to_hbm [thread:$0]  %s176, 16, %s4, [#allocation7]
    $region37: #{tpu_custom_call.1} parent=1 // pred_fallthru
      _
    // Predicated region
    $region38: #{tpu_custom_call.1} parent=1 // pred_check
      _
    $region39: #{tpu_custom_call.1} parent=1 // pred_check_branch
      %180 = sbr.rel (0) target = $region41
    $region40: #{tpu_custom_call.1} parent=1 // pred_region
      %181 = dma.done [#allocation7], 16
    $region41: #{tpu_custom_call.1} parent=1 // pred_fallthru
      _
    %182 = vsyncpa [#allocation6], 1
    %183 = vsyncpa [#allocation9], 1
    %184 = vsyncpa [#allocation7], 1

</llo_original>
